<compile_context>
chip_gen: v7x
topology: tpu7x:2x2x1
jax: 0.10.0
libtpu: 0.0.40
codegen_flags: <defaults>
</compile_context>

<pallas_src>
import functools
import math

import jax
import jax.numpy as jnp
import numpy as np
from jax import lax
from jax.experimental import pallas as pl
from jax.experimental.pallas import tpu as pltpu


def _shift_lanes(a, s):
    """b[..., p] = a[..., p + s] (zero fill past either end); s is static."""
    if s == 0:
        return a
    n = a.shape[-1]
    if s > 0:
        pad = jnp.zeros(a.shape[:-1] + (s,), a.dtype)
        return jnp.concatenate([a[..., s:], pad], axis=-1)
    pad = jnp.zeros(a.shape[:-1] + (-s,), a.dtype)
    return jnp.concatenate([pad, a[..., : n + s]], axis=-1)


def _bottleneck_kernel(x_ref, w1_ref, w2_ref, w3_ref,
                       b1_ref, b2_ref, b3_ref, o_ref, col_scr, *, width):
    Cin, HW = x_ref.shape[1], x_ref.shape[2]
    Ch = w1_ref.shape[0]
    Cout = w3_ref.shape[0]
    expansion = Cout // Cin
    W = width

    x = x_ref[0]                                       # (Cin, HW), dense lanes

    # conv1 (1x1) -> bn1 (scale pre-folded into w1) -> relu
    h1 = jnp.dot(w1_ref[...], x, preferred_element_type=jnp.float32)
    h1 = jnp.maximum(h1 + b1_ref[...], 0.0)            # (Ch, HW)

    # conv2 (3x3, pad=1) as one im2col matmul: build (9*Ch, HW) columns.
    ww = lax.broadcasted_iota(jnp.int32, (Ch, HW), 1) % W
    mask_lo = ww >= 1            # output column valid when reading w-1
    mask_hi = ww <= W - 2        # output column valid when reading w+1
    for kh in range(3):
        for kw in range(3):
            dh, dw = kh - 1, kw - 1
            slab = _shift_lanes(h1, dh * W + dw)        # zero-fill top/bottom
            if dw == -1:
                slab = jnp.where(mask_lo, slab, 0.0)    # mask row wrap-around
            elif dw == 1:
                slab = jnp.where(mask_hi, slab, 0.0)
            tap = kh * 3 + kw
            col_scr[tap * Ch:(tap + 1) * Ch, :] = slab

    h2 = jnp.dot(w2_ref[...], col_scr[...],             # (Ch,9Ch) @ (9Ch,HW)
                 preferred_element_type=jnp.float32)
    h2 = jnp.maximum(h2 + b2_ref[...], 0.0)

    # conv3 (1x1) -> bn3 (scale pre-folded)
    h3 = jnp.dot(w3_ref[...], h2, preferred_element_type=jnp.float32)
    h3 = h3 + b3_ref[...]                               # (Cout, HW)

    # residual: einops 'b c h w -> b (tile c) h w' == `expansion` stacked copies
    ident = jnp.concatenate([x] * expansion, axis=0)    # (Cout, HW), dense lanes
    o_ref[0] = jnp.maximum(h3 + ident, 0.0)


def bottleneck_expand(x_nchw, params):
    """x_nchw: (B, Cin, H, W) float32 (PyTorch layout)."""
    w1, w2, w3, s1, b1, s2, b2, s3, b3 = params
    B, Cin, H, W = x_nchw.shape
    Ch = w1.shape[0]
    Cout = w3.shape[0]
    HW = H * W

    # Free (metadata-only) reshape; no NCHW<->NHWC transpose round trips.
    x2 = x_nchw.reshape(B, Cin, HW)

    # Fold BN scales into the conv weights (one-time weight transform).
    w1f = w1 * s1[:, None]                                        # (Ch, Cin)
    w2f = w2.transpose(0, 2, 3, 1).reshape(Ch, 9 * Ch) * s2[:, None]
    w3f = w3 * s3[:, None]                                        # (Cout, Ch)
    b1c = b1.reshape(Ch, 1)
    b2c = b2.reshape(Ch, 1)
    b3c = b3.reshape(Cout, 1)

    out = pl.pallas_call(
        functools.partial(_bottleneck_kernel, width=W),
        out_shape=jax.ShapeDtypeStruct((B, Cout, HW), jnp.float32),
        grid_spec=pltpu.PrefetchScalarGridSpec(
            num_scalar_prefetch=0,
            grid=(B,),
            in_specs=[
                pl.BlockSpec((1, Cin, HW), lambda b: (b, 0, 0)),
                pl.BlockSpec((Ch, Cin), lambda b: (0, 0)),
                pl.BlockSpec((Ch, 9 * Ch), lambda b: (0, 0)),
                pl.BlockSpec((Cout, Ch), lambda b: (0, 0)),
                pl.BlockSpec((Ch, 1), lambda b: (0, 0)),
                pl.BlockSpec((Ch, 1), lambda b: (0, 0)),
                pl.BlockSpec((Cout, 1), lambda b: (0, 0)),
            ],
            out_specs=pl.BlockSpec((1, Cout, HW), lambda b: (b, 0, 0)),
            scratch_shapes=[pltpu.VMEM((9 * Ch, HW), jnp.float32)],
        ),
        compiler_params=pltpu.CompilerParams(
            dimension_semantics=("parallel",)),
    )(x2, w1f, w2f, w3f, b1c, b2c, b3c)
    return out.reshape(B, Cout, H, W)


def init_params(key, in_channels, hidden_channels, expansion):
    """Deterministic init mirroring BottleneckExpand.reset_parameters()."""
    out_channels = in_channels * expansion
    k1, k2, k3 = jax.random.split(key, 3)

    # conv1: reset_parameters overrides with N(0, 1/sqrt(conv1.weight.shape[0]))
    w1 = jax.random.normal(k1, (hidden_channels, in_channels),
                           jnp.float32) / math.sqrt(hidden_channels)
    # conv2 / conv3: variance_scaling_ (fan_in, truncated normal), OIHW / OI
    std2 = math.sqrt(1.0 / (hidden_channels * 3 * 3)) / 0.8796256610342398
    w2 = std2 * jax.random.truncated_normal(
        k2, -2.0, 2.0, (hidden_channels, hidden_channels, 3, 3), jnp.float32)
    std3 = math.sqrt(1.0 / hidden_channels) / 0.8796256610342398
    w3 = std3 * jax.random.truncated_normal(
        k3, -2.0, 2.0, (out_channels, hidden_channels), jnp.float32)

    # BatchNorm (init state, eval mode): gamma=1, beta=0, mean=0, var=1
    eps = 1e-5

    def bn(c):
        scale = jnp.full((c,), 1.0 / math.sqrt(1.0 + eps), jnp.float32)
        bias = jnp.zeros((c,), jnp.float32)
        return scale, bias

    s1, b1 = bn(hidden_channels)
    s2, b2 = bn(hidden_channels)
    s3, b3 = bn(out_channels)
    return (w1, w2, w3, s1, b1, s2, b2, s3, b3)


def reference_nchw(x, params, expansion):
    """Pure-JAX reference (NCHW, PyTorch semantics) for correctness checking."""
    w1, w2, w3, s1, b1, s2, b2, s3, b3 = params
    h = jnp.einsum('oc,bchw->bohw', w1, x)
    h = jnp.maximum(h * s1[None, :, None, None] + b1[None, :, None, None], 0.0)
    h = lax.conv_general_dilated(h, w2, window_strides=(1, 1), padding='SAME',
                                 dimension_numbers=('NCHW', 'OIHW', 'NCHW'))
    h = jnp.maximum(h * s2[None, :, None, None] + b2[None, :, None, None], 0.0)
    h = jnp.einsum('oc,bchw->bohw', w3, h)
    h = h * s3[None, :, None, None] + b3[None, :, None, None]
    ident = jnp.concatenate([x] * expansion, axis=1)   # 'b c h w -> b (tile c) h w'
    return jnp.maximum(h + ident, 0.0)


if __name__ == "__main__":
    B, Cin, H, W = 2, 4, 16, 16
    hidden = 16
    expansion = 8

    key = jax.random.PRNGKey(0)
    kx, kp = jax.random.split(key)
    x_nchw = jax.random.normal(kx, (B, Cin, H, W), jnp.float32)
    params = init_params(kp, Cin, hidden, expansion)

    out = bottleneck_expand(x_nchw, params)
    out = jax.block_until_ready(out)

    ref = reference_nchw(x_nchw, params, expansion)
    np.testing.assert_allclose(np.asarray(out), np.asarray(ref),
                               rtol=1e-3, atol=1e-3)
    print("KERNEL_OK")
</pallas_src>

<mosaic_0001>
module attributes {stable_mosaic.version = 11 : i64} {
  func.func @_bottleneck_kernel(%arg0: i32, %arg1: memref<1x4x256xf32, #tpu.memory_space<vmem>>, %arg2: memref<16x4xf32, #tpu.memory_space<vmem>>, %arg3: memref<16x144xf32, #tpu.memory_space<vmem>>, %arg4: memref<32x16xf32, #tpu.memory_space<vmem>>, %arg5: memref<16x1xf32, #tpu.memory_space<vmem>>, %arg6: memref<16x1xf32, #tpu.memory_space<vmem>>, %arg7: memref<32x1xf32, #tpu.memory_space<vmem>>, %arg8: memref<1x32x256xf32, #tpu.memory_space<vmem>>, %arg9: memref<144x256xf32, #tpu.memory_space<vmem>>) attributes {dimension_semantics = [#tpu.dimension_semantics<parallel>], iteration_bounds = array<i64: 2>, scalar_prefetch = 0 : i64, scratch_operands = 1 : i64, tpu.core_type = #tpu.core_type<tc>, window_params = [{transform_indices = @transform_0, window_bounds = array<i64: 1, 4, 256>}, {pipeline_mode = #tpu.pipeline_mode<synchronous>, transform_indices = @transform_1, window_bounds = array<i64: 16, 4>}, {pipeline_mode = #tpu.pipeline_mode<synchronous>, transform_indices = @transform_2, window_bounds = array<i64: 16, 144>}, {pipeline_mode = #tpu.pipeline_mode<synchronous>, transform_indices = @transform_3, window_bounds = array<i64: 32, 16>}, {pipeline_mode = #tpu.pipeline_mode<synchronous>, transform_indices = @transform_4, window_bounds = array<i64: 16, 1>}, {pipeline_mode = #tpu.pipeline_mode<synchronous>, transform_indices = @transform_5, window_bounds = array<i64: 16, 1>}, {pipeline_mode = #tpu.pipeline_mode<synchronous>, transform_indices = @transform_6, window_bounds = array<i64: 32, 1>}, {transform_indices = @transform_7, window_bounds = array<i64: 1, 32, 256>}]} {
    %c0 = arith.constant 0 : index
    %c0_0 = arith.constant 0 : index
    %c0_1 = arith.constant 0 : index
    %0 = vector.load %arg1[%c0, %c0_0, %c0_1] : memref<1x4x256xf32, #tpu.memory_space<vmem>>, vector<1x4x256xf32>
    %1 = vector.shape_cast %0 : vector<1x4x256xf32> to vector<4x256xf32>
    %c0_2 = arith.constant 0 : index
    %c0_3 = arith.constant 0 : index
    %2 = vector.load %arg2[%c0_2, %c0_3] : memref<16x4xf32, #tpu.memory_space<vmem>>, vector<16x4xf32>
    %cst = arith.constant dense<0.000000e+00> : vector<16x256xf32>
    %3 = tpu.matmul %2, %1, %cst {dimension_numbers = #tpu.dot_dimension_numbers<[1], [0], [0], [1], [0, 0, 1, 1], [], []>} : vector<16x4xf32>, vector<4x256xf32>, vector<16x256xf32> -> vector<16x256xf32>
    %c0_4 = arith.constant 0 : index
    %c0_5 = arith.constant 0 : index
    %4 = vector.load %arg5[%c0_4, %c0_5] : memref<16x1xf32, #tpu.memory_space<vmem>>, vector<16x1xf32>
    %5 = vector.broadcast %4 : vector<16x1xf32> to vector<16x256xf32>
    %6 = arith.addf %3, %5 : vector<16x256xf32>
    %cst_6 = arith.constant 0.000000e+00 : f32
    %7 = vector.broadcast %cst_6 : f32 to vector<16x256xf32>
    %8 = arith.maximumf %6, %7 : vector<16x256xf32>
    %9 = tpu.iota {dimensions = array<i32: 1>} : vector<16x256xi32>
    %c16_i32 = arith.constant 16 : i32
    %c0_i32 = arith.constant 0 : i32
    %10 = arith.cmpi eq, %c16_i32, %c0_i32 : i32
    %c1_i32 = arith.constant 1 : i32
    %11 = arith.select %10, %c1_i32, %c16_i32 : i32
    %12 = vector.broadcast %11 : i32 to vector<16x256xi32>
    %13 = arith.remsi %9, %12 : vector<16x256xi32>
    %c0_i32_7 = arith.constant 0 : i32
    %14 = vector.broadcast %c0_i32_7 : i32 to vector<16x256xi32>
    %15 = arith.cmpi ne, %13, %14 : vector<16x256xi32>
    %c0_i32_8 = arith.constant 0 : i32
    %16 = vector.broadcast %c0_i32_8 : i32 to vector<16x256xi32>
    %17 = arith.cmpi slt, %13, %16 : vector<16x256xi32>
    %c0_i32_9 = arith.constant 0 : i32
    %18 = arith.cmpi slt, %11, %c0_i32_9 : i32
    %19 = vector.broadcast %18 : i1 to vector<16x256xi1>
    %20 = vector.broadcast %19 : vector<16x256xi1> to vector<16x256xi1>
    %21 = arith.xori %17, %20 : vector<16x256xi1>
    %22 = arith.andi %21, %15 : vector<16x256xi1>
    %23 = vector.broadcast %11 : i32 to vector<16x256xi32>
    %24 = arith.addi %13, %23 : vector<16x256xi32>
    %25 = arith.select %22, %24, %13 : vector<16x256xi1>, vector<16x256xi32>
    %c1_i32_10 = arith.constant 1 : i32
    %26 = vector.broadcast %c1_i32_10 : i32 to vector<16x256xi32>
    %27 = arith.cmpi sge, %25, %26 : vector<16x256xi32>
    %c14_i32 = arith.constant 14 : i32
    %28 = vector.broadcast %c14_i32 : i32 to vector<16x256xi32>
    %29 = arith.cmpi sle, %25, %28 : vector<16x256xi32>
    %cst_11 = arith.constant 0.000000e+00 : f32
    %30 = vector.broadcast %cst_11 : f32 to vector<16x17xf32>
    %31 = vector.extract_strided_slice %8 {offsets = [0, 0], sizes = [16, 239], strides = [1, 1]} : vector<16x256xf32> to vector<16x239xf32>
    %32 = tpu.concatenate %30, %31 in 1 : vector<16x17xf32>, vector<16x239xf32> -> vector<16x256xf32>
    %cst_12 = arith.constant 0.000000e+00 : f32
    %33 = vector.broadcast %cst_12 : f32 to vector<16x256xf32>
    %34 = arith.select %27, %32, %33 : vector<16x256xi1>, vector<16x256xf32>
    %c0_13 = arith.constant 0 : index
    %c0_14 = arith.constant 0 : index
    %35 = vector.load %arg9[%c0_13, %c0_14] : memref<144x256xf32, #tpu.memory_space<vmem>>, vector<16x256xf32>
    tpu.vector_store %arg9[%c0_13, %c0_14], %34 {strides = array<i32>} : memref<144x256xf32, #tpu.memory_space<vmem>>, vector<16x256xf32>,
    %cst_15 = arith.constant 0.000000e+00 : f32
    %36 = vector.broadcast %cst_15 : f32 to vector<16x16xf32>
    %37 = vector.extract_strided_slice %8 {offsets = [0, 0], sizes = [16, 240], strides = [1, 1]} : vector<16x256xf32> to vector<16x240xf32>
    %38 = tpu.concatenate %36, %37 in 1 : vector<16x16xf32>, vector<16x240xf32> -> vector<16x256xf32>
    %c16 = arith.constant 16 : index
    %c0_16 = arith.constant 0 : index
    %39 = vector.load %arg9[%c16, %c0_16] : memref<144x256xf32, #tpu.memory_space<vmem>>, vector<16x256xf32>
    tpu.vector_store %arg9[%c16, %c0_16], %38 {strides = array<i32>} : memref<144x256xf32, #tpu.memory_space<vmem>>, vector<16x256xf32>,
    %cst_17 = arith.constant 0.000000e+00 : f32
    %40 = vector.broadcast %cst_17 : f32 to vector<16x15xf32>
    %41 = vector.extract_strided_slice %8 {offsets = [0, 0], sizes = [16, 241], strides = [1, 1]} : vector<16x256xf32> to vector<16x241xf32>
    %42 = tpu.concatenate %40, %41 in 1 : vector<16x15xf32>, vector<16x241xf32> -> vector<16x256xf32>
    %cst_18 = arith.constant 0.000000e+00 : f32
    %43 = vector.broadcast %cst_18 : f32 to vector<16x256xf32>
    %44 = arith.select %29, %42, %43 : vector<16x256xi1>, vector<16x256xf32>
    %c32 = arith.constant 32 : index
    %c0_19 = arith.constant 0 : index
    %45 = vector.load %arg9[%c32, %c0_19] : memref<144x256xf32, #tpu.memory_space<vmem>>, vector<16x256xf32>
    tpu.vector_store %arg9[%c32, %c0_19], %44 {strides = array<i32>} : memref<144x256xf32, #tpu.memory_space<vmem>>, vector<16x256xf32>,
    %cst_20 = arith.constant 0.000000e+00 : f32
    %46 = vector.broadcast %cst_20 : f32 to vector<16x1xf32>
    %47 = vector.extract_strided_slice %8 {offsets = [0, 0], sizes = [16, 255], strides = [1, 1]} : vector<16x256xf32> to vector<16x255xf32>
    %48 = tpu.concatenate %46, %47 in 1 : vector<16x1xf32>, vector<16x255xf32> -> vector<16x256xf32>
    %cst_21 = arith.constant 0.000000e+00 : f32
    %49 = vector.broadcast %cst_21 : f32 to vector<16x256xf32>
    %50 = arith.select %27, %48, %49 : vector<16x256xi1>, vector<16x256xf32>
    %c48 = arith.constant 48 : index
    %c0_22 = arith.constant 0 : index
    %51 = vector.load %arg9[%c48, %c0_22] : memref<144x256xf32, #tpu.memory_space<vmem>>, vector<16x256xf32>
    tpu.vector_store %arg9[%c48, %c0_22], %50 {strides = array<i32>} : memref<144x256xf32, #tpu.memory_space<vmem>>, vector<16x256xf32>,
    %c64 = arith.constant 64 : index
    %c0_23 = arith.constant 0 : index
    %52 = vector.load %arg9[%c64, %c0_23] : memref<144x256xf32, #tpu.memory_space<vmem>>, vector<16x256xf32>
    tpu.vector_store %arg9[%c64, %c0_23], %8 {strides = array<i32>} : memref<144x256xf32, #tpu.memory_space<vmem>>, vector<16x256xf32>,
    %cst_24 = arith.constant 0.000000e+00 : f32
    %53 = vector.broadcast %cst_24 : f32 to vector<16x1xf32>
    %54 = vector.extract_strided_slice %8 {offsets = [0, 1], sizes = [16, 255], strides = [1, 1]} : vector<16x256xf32> to vector<16x255xf32>
    %55 = tpu.concatenate %54, %53 in 1 : vector<16x255xf32>, vector<16x1xf32> -> vector<16x256xf32>
    %cst_25 = arith.constant 0.000000e+00 : f32
    %56 = vector.broadcast %cst_25 : f32 to vector<16x256xf32>
    %57 = arith.select %29, %55, %56 : vector<16x256xi1>, vector<16x256xf32>
    %c80 = arith.constant 80 : index
    %c0_26 = arith.constant 0 : index
    %58 = vector.load %arg9[%c80, %c0_26] : memref<144x256xf32, #tpu.memory_space<vmem>>, vector<16x256xf32>
    tpu.vector_store %arg9[%c80, %c0_26], %57 {strides = array<i32>} : memref<144x256xf32, #tpu.memory_space<vmem>>, vector<16x256xf32>,
    %cst_27 = arith.constant 0.000000e+00 : f32
    %59 = vector.broadcast %cst_27 : f32 to vector<16x15xf32>
    %60 = vector.extract_strided_slice %8 {offsets = [0, 15], sizes = [16, 241], strides = [1, 1]} : vector<16x256xf32> to vector<16x241xf32>
    %61 = tpu.concatenate %60, %59 in 1 : vector<16x241xf32>, vector<16x15xf32> -> vector<16x256xf32>
    %cst_28 = arith.constant 0.000000e+00 : f32
    %62 = vector.broadcast %cst_28 : f32 to vector<16x256xf32>
    %63 = arith.select %27, %61, %62 : vector<16x256xi1>, vector<16x256xf32>
    %c96 = arith.constant 96 : index
    %c0_29 = arith.constant 0 : index
    %64 = vector.load %arg9[%c96, %c0_29] : memref<144x256xf32, #tpu.memory_space<vmem>>, vector<16x256xf32>
    tpu.vector_store %arg9[%c96, %c0_29], %63 {strides = array<i32>} : memref<144x256xf32, #tpu.memory_space<vmem>>, vector<16x256xf32>,
    %cst_30 = arith.constant 0.000000e+00 : f32
    %65 = vector.broadcast %cst_30 : f32 to vector<16x16xf32>
    %66 = vector.extract_strided_slice %8 {offsets = [0, 16], sizes = [16, 240], strides = [1, 1]} : vector<16x256xf32> to vector<16x240xf32>
    %67 = tpu.concatenate %66, %65 in 1 : vector<16x240xf32>, vector<16x16xf32> -> vector<16x256xf32>
    %c112 = arith.constant 112 : index
    %c0_31 = arith.constant 0 : index
    %68 = vector.load %arg9[%c112, %c0_31] : memref<144x256xf32, #tpu.memory_space<vmem>>, vector<16x256xf32>
    tpu.vector_store %arg9[%c112, %c0_31], %67 {strides = array<i32>} : memref<144x256xf32, #tpu.memory_space<vmem>>, vector<16x256xf32>,
    %cst_32 = arith.constant 0.000000e+00 : f32
    %69 = vector.broadcast %cst_32 : f32 to vector<16x17xf32>
    %70 = vector.extract_strided_slice %8 {offsets = [0, 17], sizes = [16, 239], strides = [1, 1]} : vector<16x256xf32> to vector<16x239xf32>
    %71 = tpu.concatenate %70, %69 in 1 : vector<16x239xf32>, vector<16x17xf32> -> vector<16x256xf32>
    %cst_33 = arith.constant 0.000000e+00 : f32
    %72 = vector.broadcast %cst_33 : f32 to vector<16x256xf32>
    %73 = arith.select %29, %71, %72 : vector<16x256xi1>, vector<16x256xf32>
    %c128 = arith.constant 128 : index
    %c0_34 = arith.constant 0 : index
    %74 = vector.load %arg9[%c128, %c0_34] : memref<144x256xf32, #tpu.memory_space<vmem>>, vector<16x256xf32>
    tpu.vector_store %arg9[%c128, %c0_34], %73 {strides = array<i32>} : memref<144x256xf32, #tpu.memory_space<vmem>>, vector<16x256xf32>,
    %c0_35 = arith.constant 0 : index
    %c0_36 = arith.constant 0 : index
    %75 = vector.load %arg3[%c0_35, %c0_36] : memref<16x144xf32, #tpu.memory_space<vmem>>, vector<16x144xf32>
    %c0_37 = arith.constant 0 : index
    %c0_38 = arith.constant 0 : index
    %76 = vector.load %arg9[%c0_37, %c0_38] : memref<144x256xf32, #tpu.memory_space<vmem>>, vector<144x256xf32>
    %cst_39 = arith.constant dense<0.000000e+00> : vector<16x256xf32>
    %77 = tpu.matmul %75, %76, %cst_39 {dimension_numbers = #tpu.dot_dimension_numbers<[1], [0], [0], [1], [0, 0, 1, 1], [], []>} : vector<16x144xf32>, vector<144x256xf32>, vector<16x256xf32> -> vector<16x256xf32>
    %c0_40 = arith.constant 0 : index
    %c0_41 = arith.constant 0 : index
    %78 = vector.load %arg6[%c0_40, %c0_41] : memref<16x1xf32, #tpu.memory_space<vmem>>, vector<16x1xf32>
    %79 = vector.broadcast %78 : vector<16x1xf32> to vector<16x256xf32>
    %80 = arith.addf %77, %79 : vector<16x256xf32>
    %cst_42 = arith.constant 0.000000e+00 : f32
    %81 = vector.broadcast %cst_42 : f32 to vector<16x256xf32>
    %82 = arith.maximumf %80, %81 : vector<16x256xf32>
    %c0_43 = arith.constant 0 : index
    %c0_44 = arith.constant 0 : index
    %83 = vector.load %arg4[%c0_43, %c0_44] : memref<32x16xf32, #tpu.memory_space<vmem>>, vector<32x16xf32>
    %cst_45 = arith.constant dense<0.000000e+00> : vector<32x256xf32>
    %84 = tpu.matmul %83, %82, %cst_45 {dimension_numbers = #tpu.dot_dimension_numbers<[1], [0], [0], [1], [0, 0, 1, 1], [], []>} : vector<32x16xf32>, vector<16x256xf32>, vector<32x256xf32> -> vector<32x256xf32>
    %c0_46 = arith.constant 0 : index
    %c0_47 = arith.constant 0 : index
    %85 = vector.load %arg7[%c0_46, %c0_47] : memref<32x1xf32, #tpu.memory_space<vmem>>, vector<32x1xf32>
    %86 = vector.broadcast %85 : vector<32x1xf32> to vector<32x256xf32>
    %87 = arith.addf %84, %86 : vector<32x256xf32>
    %88 = tpu.concatenate %1, %1, %1, %1, %1, %1, %1, %1 in 0 : vector<4x256xf32>, vector<4x256xf32>, vector<4x256xf32>, vector<4x256xf32>, vector<4x256xf32>, vector<4x256xf32>, vector<4x256xf32>, vector<4x256xf32> -> vector<32x256xf32>
    %89 = arith.addf %87, %88 : vector<32x256xf32>
    %cst_48 = arith.constant 0.000000e+00 : f32
    %90 = vector.broadcast %cst_48 : f32 to vector<32x256xf32>
    %91 = arith.maximumf %89, %90 : vector<32x256xf32>
    %c0_49 = arith.constant 0 : index
    %c0_50 = arith.constant 0 : index
    %c0_51 = arith.constant 0 : index
    %92 = vector.load %arg8[%c0_49, %c0_50, %c0_51] : memref<1x32x256xf32, #tpu.memory_space<vmem>>, vector<1x32x256xf32>
    %93 = vector.shape_cast %92 : vector<1x32x256xf32> to vector<32x256xf32>
    %94 = vector.shape_cast %91 : vector<32x256xf32> to vector<1x32x256xf32>
    tpu.vector_store %arg8[%c0_49, %c0_50, %c0_51], %94 {strides = array<i32>} : memref<1x32x256xf32, #tpu.memory_space<vmem>>, vector<1x32x256xf32>,
    return
  }
  func.func @transform_0(%arg0: i32) -> (i32, i32, i32) {
    %c0_i32 = arith.constant 0 : i32
    %c0_i32_0 = arith.constant 0 : i32
    %c0_i32_1 = arith.constant 0 : i32
    return %arg0, %c0_i32, %c0_i32_0 : i32, i32, i32
  }
  func.func @transform_1(%arg0: i32) -> (i32, i32) {
    %c0_i32 = arith.constant 0 : i32
    %c0_i32_0 = arith.constant 0 : i32
    %c0_i32_1 = arith.constant 0 : i32
    return %c0_i32, %c0_i32_0 : i32, i32
  }
  func.func @transform_2(%arg0: i32) -> (i32, i32) {
    %c0_i32 = arith.constant 0 : i32
    %c0_i32_0 = arith.constant 0 : i32
    %c0_i32_1 = arith.constant 0 : i32
    return %c0_i32, %c0_i32_0 : i32, i32
  }
  func.func @transform_3(%arg0: i32) -> (i32, i32) {
    %c0_i32 = arith.constant 0 : i32
    %c0_i32_0 = arith.constant 0 : i32
    %c0_i32_1 = arith.constant 0 : i32
    return %c0_i32, %c0_i32_0 : i32, i32
  }
  func.func @transform_4(%arg0: i32) -> (i32, i32) {
    %c0_i32 = arith.constant 0 : i32
    %c0_i32_0 = arith.constant 0 : i32
    %c0_i32_1 = arith.constant 0 : i32
    return %c0_i32, %c0_i32_0 : i32, i32
  }
  func.func @transform_5(%arg0: i32) -> (i32, i32) {
    %c0_i32 = arith.constant 0 : i32
    %c0_i32_0 = arith.constant 0 : i32
    %c0_i32_1 = arith.constant 0 : i32
    return %c0_i32, %c0_i32_0 : i32, i32
  }
  func.func @transform_6(%arg0: i32) -> (i32, i32) {
    %c0_i32 = arith.constant 0 : i32
    %c0_i32_0 = arith.constant 0 : i32
    %c0_i32_1 = arith.constant 0 : i32
    return %c0_i32, %c0_i32_0 : i32, i32
  }
  func.func @transform_7(%arg0: i32) -> (i32, i32, i32) {
    %c0_i32 = arith.constant 0 : i32
    %c0_i32_0 = arith.constant 0 : i32
    %c0_i32_1 = arith.constant 0 : i32
    return %arg0, %c0_i32, %c0_i32_0 : i32, i32, i32
  }
}

</mosaic_0001>

<llo_original>
// kernel: tpu_custom_call.1
$region0: #{tpu_custom_call.1}
  #allocation0 [shape = 'u32[]', space=smem, size = 0x4, offset = 0x4, fixed_abs, tag = 'smem constant byte address 0x4 - core index']
  #allocation1 [shape = 'u32[144,128]{1,0:T(1,128)}', space=vmem, size = 0x12000, scoped, tag = 'internal scratch']
  #allocation2 [shape = 'f32[144,256]{1,0:T(8,128)}', space=vmem, size = 0x24000, scoped, tag = 'scratch operand']
  %s0 = inlined_call_operand.vmem [shape: f32[2,4,256], index: 0, kind: input, shape index: {}]
  %s1 = inlined_call_operand.vmem [shape: f32[16,4], index: 1, kind: input, shape index: {}]
  %s2 = inlined_call_operand.vmem [shape: f32[16,144], index: 2, kind: input, shape index: {}]
  %s3 = inlined_call_operand.vmem [shape: f32[32,16], index: 3, kind: input, shape index: {}]
  %s4 = inlined_call_operand.vmem [shape: f32[16,1], index: 4, kind: input, shape index: {}]
  %s5 = inlined_call_operand.vmem [shape: f32[16,1], index: 5, kind: input, shape index: {}]
  %s6 = inlined_call_operand.vmem [shape: f32[32,1], index: 6, kind: input, shape index: {}]
  %s7 = inlined_call_operand.hbm [shape: f32[2,32,256], index: 7, kind: output, shape index: {}]
  %s8 = sld [smem:[#allocation0]]
  $region61: #{tpu_custom_call.1} parent=0
    _
  %s10 = ssub.s32 1, %s8
  %s11 = scalar_select 0, %s10, %s8
  $region1: #{tpu_custom_call.1} parent=0
    #allocation3 [shape = 'u8[65536]{0}', space=vmem, size = 0x10000, scoped, tag = 'output window, operand 0']
    #allocation4 [shape = 's32[2]{0}', space=sflag, size = 0x8, scoped, tag = 'scoped memory for tpu_custom_call.1']
    %12 = vsyncpa [#allocation4], 0
    %s13 = scalar_lea.sflag [#allocation4], 1
    %14 = vsyncpa %s13, 0
    loop: start=0, step=1, limit=4
    $region2: #{tpu_custom_call.1} parent=1 // loop_pre_header
      _
    $region3: #{tpu_custom_call.1} parent=1 // loop_header
      %s16 = sphi 0, %s20
      %p17 = scmp.ge.s32.totalorder %s16, 4
      %s26 = sphi 0, %s28
      %s29 = sphi 0, %s26
      %s30 = sphi 0, %s29
      %s46 = sphi 0, %s30
      %s50 = sphi 0, %s50
      %s52 = sphi 0, %s50
      %s53 = sphi 0, %s52
      %s67 = sphi 0, %s53
      %s71 = sphi 0, %s71
      %s73 = sphi 0, %s71
      %s74 = sphi 0, %s73
      %s88 = sphi 0, %s74
      %s92 = sphi 0, %s92
      %s94 = sphi 0, %s92
      %s95 = sphi 0, %s94
      %s109 = sphi 0, %s95
      %s113 = sphi 0, %s113
      %s115 = sphi 0, %s113
      %s116 = sphi 0, %s115
      %s130 = sphi 0, %s116
      %s134 = sphi 0, %s134
      %s136 = sphi 0, %s134
      %s137 = sphi 0, %s136
      %s151 = sphi 0, %s137
      %s155 = sphi 0, %s155
      %s157 = sphi 0, %s155
      %s158 = sphi 0, %s157
      %s172 = sphi 0, %s158
      %s178 = sphi 0, %s180
      %s181 = sphi 0, %s178
      %s182 = sphi 0, %s181
      %s198 = sphi 0, %s182
    $region4: #{tpu_custom_call.1} parent=1 // loop_header_branch
      %19 = sbr.rel (%p17) target = $region8
    $region5: #{tpu_custom_call.1} parent=1 // loop_body
      %s21 = ssub.s32 %s16, 1
      %s22 = ssub.s32 %s16, 2
      %s23 = sadd.s32 %s16, 1
      %s24 = ssub.s32 %s16, %s23
      %p25 = scmp.eq.s32.totalorder %s24, 0
      %s27 = sadd.s32 %s26, 1
      %s28 = scalar_select %p25, %s26, %s27
      %p31 = pneg %p25
      %p32 = scmp.eq.s32.totalorder %s16, 1
      %p33 = por %p31, %p32
      %p34 = scmp.ne.s32.totalorder %s26, %s29
      %p35 = scmp.eq.s32.totalorder %s16, 0
      %p36 = por %p34, %p35
      %p37 = scmp.ne.s32.totalorder %s26, %s29
      %p38 = scmp.eq.s32.totalorder %s21, 1
      %p39 = por %p37, %p38
      %p40 = scmp.ne.s32.totalorder %s29, %s30
      %p41 = scmp.eq.s32.totalorder %s21, 0
      %p42 = por %p40, %p41
      %p43 = scmp.ne.s32.totalorder %s29, %s30
      %p44 = scmp.eq.s32.totalorder %s22, 1
      %p45 = por %p43, %p44
      %p47 = scmp.ne.s32.totalorder %s30, %s46
      %p48 = scmp.eq.s32.totalorder %s22, 0
      %p49 = por %p47, %p48
      %s51 = sadd.s32 %s50, 1
      %p54 = scmp.eq.s32.totalorder %s16, 1
      %p55 = scmp.ne.s32.totalorder %s50, %s52
      %p56 = scmp.eq.s32.totalorder %s16, 0
      %p57 = por %p55, %p56
      %p58 = scmp.ne.s32.totalorder %s50, %s52
      %p59 = scmp.eq.s32.totalorder %s21, 1
      %p60 = por %p58, %p59
      %p61 = scmp.ne.s32.totalorder %s52, %s53
      %p62 = scmp.eq.s32.totalorder %s21, 0
      %p63 = por %p61, %p62
      %p64 = scmp.ne.s32.totalorder %s52, %s53
      %p65 = scmp.eq.s32.totalorder %s22, 1
      %p66 = por %p64, %p65
      %p68 = scmp.ne.s32.totalorder %s53, %s67
      %p69 = scmp.eq.s32.totalorder %s22, 0
      %p70 = por %p68, %p69
      %s72 = sadd.s32 %s71, 1
      %p75 = scmp.eq.s32.totalorder %s16, 1
      %p76 = scmp.ne.s32.totalorder %s71, %s73
      %p77 = scmp.eq.s32.totalorder %s16, 0
      %p78 = por %p76, %p77
      %p79 = scmp.ne.s32.totalorder %s71, %s73
      %p80 = scmp.eq.s32.totalorder %s21, 1
      %p81 = por %p79, %p80
      %p82 = scmp.ne.s32.totalorder %s73, %s74
      %p83 = scmp.eq.s32.totalorder %s21, 0
      %p84 = por %p82, %p83
      %p85 = scmp.ne.s32.totalorder %s73, %s74
      %p86 = scmp.eq.s32.totalorder %s22, 1
      %p87 = por %p85, %p86
      %p89 = scmp.ne.s32.totalorder %s74, %s88
      %p90 = scmp.eq.s32.totalorder %s22, 0
      %p91 = por %p89, %p90
      %s93 = sadd.s32 %s92, 1
      %p96 = scmp.eq.s32.totalorder %s16, 1
      %p97 = scmp.ne.s32.totalorder %s92, %s94
      %p98 = scmp.eq.s32.totalorder %s16, 0
      %p99 = por %p97, %p98
      %p100 = scmp.ne.s32.totalorder %s92, %s94
      %p101 = scmp.eq.s32.totalorder %s21, 1
      %p102 = por %p100, %p101
      %p103 = scmp.ne.s32.totalorder %s94, %s95
      %p104 = scmp.eq.s32.totalorder %s21, 0
      %p105 = por %p103, %p104
      %p106 = scmp.ne.s32.totalorder %s94, %s95
      %p107 = scmp.eq.s32.totalorder %s22, 1
      %p108 = por %p106, %p107
      %p110 = scmp.ne.s32.totalorder %s95, %s109
      %p111 = scmp.eq.s32.totalorder %s22, 0
      %p112 = por %p110, %p111
      %s114 = sadd.s32 %s113, 1
      %p117 = scmp.eq.s32.totalorder %s16, 1
      %p118 = scmp.ne.s32.totalorder %s113, %s115
      %p119 = scmp.eq.s32.totalorder %s16, 0
      %p120 = por %p118, %p119
      %p121 = scmp.ne.s32.totalorder %s113, %s115
      %p122 = scmp.eq.s32.totalorder %s21, 1
      %p123 = por %p121, %p122
      %p124 = scmp.ne.s32.totalorder %s115, %s116
      %p125 = scmp.eq.s32.totalorder %s21, 0
      %p126 = por %p124, %p125
      %p127 = scmp.ne.s32.totalorder %s115, %s116
      %p128 = scmp.eq.s32.totalorder %s22, 1
      %p129 = por %p127, %p128
      %p131 = scmp.ne.s32.totalorder %s116, %s130
      %p132 = scmp.eq.s32.totalorder %s22, 0
      %p133 = por %p131, %p132
      %s135 = sadd.s32 %s134, 1
      %p138 = scmp.eq.s32.totalorder %s16, 1
      %p139 = scmp.ne.s32.totalorder %s134, %s136
      %p140 = scmp.eq.s32.totalorder %s16, 0
      %p141 = por %p139, %p140
      %p142 = scmp.ne.s32.totalorder %s134, %s136
      %p143 = scmp.eq.s32.totalorder %s21, 1
      %p144 = por %p142, %p143
      %p145 = scmp.ne.s32.totalorder %s136, %s137
      %p146 = scmp.eq.s32.totalorder %s21, 0
      %p147 = por %p145, %p146
      %p148 = scmp.ne.s32.totalorder %s136, %s137
      %p149 = scmp.eq.s32.totalorder %s22, 1
      %p150 = por %p148, %p149
      %p152 = scmp.ne.s32.totalorder %s137, %s151
      %p153 = scmp.eq.s32.totalorder %s22, 0
      %p154 = por %p152, %p153
      %s156 = sadd.s32 %s155, 1
      %p159 = scmp.eq.s32.totalorder %s16, 1
      %p160 = scmp.ne.s32.totalorder %s155, %s157
      %p161 = scmp.eq.s32.totalorder %s16, 0
      %p162 = por %p160, %p161
      %p163 = scmp.ne.s32.totalorder %s155, %s157
      %p164 = scmp.eq.s32.totalorder %s21, 1
      %p165 = por %p163, %p164
      %p166 = scmp.ne.s32.totalorder %s157, %s158
      %p167 = scmp.eq.s32.totalorder %s21, 0
      %p168 = por %p166, %p167
      %p169 = scmp.ne.s32.totalorder %s157, %s158
      %p170 = scmp.eq.s32.totalorder %s22, 1
      %p171 = por %p169, %p170
      %p173 = scmp.ne.s32.totalorder %s158, %s172
      %p174 = scmp.eq.s32.totalorder %s22, 0
      %p175 = por %p173, %p174
      %s176 = ssub.s32 %s16, %s23
      %p177 = scmp.eq.s32.totalorder %s176, 0
      %s179 = sadd.s32 %s178, 1
      %s180 = scalar_select %p177, %s178, %s179
      %p183 = pneg %p177
      %p184 = scmp.eq.s32.totalorder %s16, 1
      %p185 = por %p183, %p184
      %p186 = scmp.ne.s32.totalorder %s178, %s181
      %p187 = scmp.eq.s32.totalorder %s16, 0
      %p188 = por %p186, %p187
      %p189 = scmp.ne.s32.totalorder %s178, %s181
      %p190 = scmp.eq.s32.totalorder %s21, 1
      %p191 = por %p189, %p190
      %p192 = scmp.ne.s32.totalorder %s181, %s182
      %p193 = scmp.eq.s32.totalorder %s21, 0
      %p194 = por %p192, %p193
      %p195 = scmp.ne.s32.totalorder %s181, %s182
      %p196 = scmp.eq.s32.totalorder %s22, 1
      %p197 = por %p195, %p196
      %p199 = scmp.ne.s32.totalorder %s182, %s198
      %p200 = scmp.eq.s32.totalorder %s22, 0
      %p201 = por %p199, %p200
      %p202 = scmp.le.s32.totalorder 1, %s16
      %p203 = scmp.lt.s32.totalorder %s16, 3
      %p204 = pnand %p202, %p203
      %p205 = pneg %p204
      // Predicated region
      $region9: #{tpu_custom_call.1} parent=5 // pred_check
        _
      $region10: #{tpu_custom_call.1} parent=5 // pred_check_branch
        %207 = sbr.rel (%p204) target = $region12
      $region11: #{tpu_custom_call.1} parent=5 // pred_region
        %s208 = ssub.s32 %s16, 1
        // Predicated region
        $region13: #{tpu_custom_call.1} parent=11 // pred_check
          %p209 = pneg %p63
        $region14: #{tpu_custom_call.1} parent=11 // pred_check_branch
          %211 = sbr.rel (%p209) target = $region16
        $region15: #{tpu_custom_call.1} parent=11 // pred_region
          _
        $region16: #{tpu_custom_call.1} parent=11 // pred_fallthru
          _
        // Predicated region
        $region17: #{tpu_custom_call.1} parent=11 // pred_check
          %p212 = pneg %p84
        $region18: #{tpu_custom_call.1} parent=11 // pred_check_branch
          %214 = sbr.rel (%p212) target = $region20
        $region19: #{tpu_custom_call.1} parent=11 // pred_region
          _
        $region20: #{tpu_custom_call.1} parent=11 // pred_fallthru
          _
        // Predicated region
        $region21: #{tpu_custom_call.1} parent=11 // pred_check
          %p215 = pneg %p105
        $region22: #{tpu_custom_call.1} parent=11 // pred_check_branch
          %217 = sbr.rel (%p215) target = $region24
        $region23: #{tpu_custom_call.1} parent=11 // pred_region
          _
        $region24: #{tpu_custom_call.1} parent=11 // pred_fallthru
          _
        // Predicated region
        $region25: #{tpu_custom_call.1} parent=11 // pred_check
          %p218 = pneg %p126
        $region26: #{tpu_custom_call.1} parent=11 // pred_check_branch
          %220 = sbr.rel (%p218) target = $region28
        $region27: #{tpu_custom_call.1} parent=11 // pred_region
          _
        $region28: #{tpu_custom_call.1} parent=11 // pred_fallthru
          _
        // Predicated region
        $region29: #{tpu_custom_call.1} parent=11 // pred_check
          %p221 = pneg %p147
        $region30: #{tpu_custom_call.1} parent=11 // pred_check_branch
          %223 = sbr.rel (%p221) target = $region32
        $region31: #{tpu_custom_call.1} parent=11 // pred_region
          _
        $region32: #{tpu_custom_call.1} parent=11 // pred_fallthru
          _
        // Predicated region
        $region33: #{tpu_custom_call.1} parent=11 // pred_check
          %p224 = pneg %p168
        $region34: #{tpu_custom_call.1} parent=11 // pred_check_branch
          %226 = sbr.rel (%p224) target = $region36
        $region35: #{tpu_custom_call.1} parent=11 // pred_region
          _
        $region36: #{tpu_custom_call.1} parent=11 // pred_fallthru
          _
      $region12: #{tpu_custom_call.1} parent=5 // pred_fallthru
        _
      %p227 = scmp.lt.s32.totalorder %s16, 2
      // Predicated region
      $region37: #{tpu_custom_call.1} parent=5 // pred_check
        %p228 = pneg %p227
      $region38: #{tpu_custom_call.1} parent=5 // pred_check_branch
        %230 = sbr.rel (%p228) target = $region40
      $region39: #{tpu_custom_call.1} parent=5 // pred_region
        // Predicated region
        $region41: #{tpu_custom_call.1} parent=39 // pred_check
          %p231 = pneg %p36
        $region42: #{tpu_custom_call.1} parent=39 // pred_check_branch
          %233 = sbr.rel (%p231) target = $region44
        $region43: #{tpu_custom_call.1} parent=39 // pred_region
          %p234 = scmp.lt.s32.totalorder %s16, 1
          %s235 = scalar_select %p234, %s16, 1
          %s236 = smul.addr %s235, 2
          %s237 = smul.addr %s236, 4
          %s238 = scalar_lea.vmem %s0, %s237
        $region44: #{tpu_custom_call.1} parent=39 // pred_fallthru
          _
      $region40: #{tpu_custom_call.1} parent=5 // pred_fallthru
        _
      %p239 = scmp.le.s32.totalorder 1, %s16
      %p240 = scmp.lt.s32.totalorder %s16, 3
      %p241 = pnand %p239, %p240
      %p242 = pneg %p241
      // Predicated region
      $region45: #{tpu_custom_call.1} parent=5 // pred_check
        _
      $region46: #{tpu_custom_call.1} parent=5 // pred_check_branch
        %244 = sbr.rel (%p241) target = $region48
      $region47: #{tpu_custom_call.1} parent=5 // pred_region
        %s245 = ssub.s32 %s16, 1
        %p246 = scmp.lt.s32.totalorder %s21, 1
        %s247 = scalar_select %p246, %s21, 1
        %s248 = smul.addr %s247, 2
        %s249 = smul.addr %s248, 4
        %s250 = scalar_lea.vmem %s0, %s249
        %p251 = pneg %p42
        %p252 = pneg %p39
        %p253 = pneg %p63
        %p254 = pneg %p60
        %p255 = pneg %p84
        %p256 = pneg %p81
        %p257 = pneg %p105
        %p258 = pneg %p102
        %p259 = pneg %p126
        %p260 = pneg %p123
        %p261 = pneg %p147
        %p262 = pneg %p144
        %p263 = pneg %p168
        %p264 = pneg %p165
        %p265 = pneg %p194
        %p266 = pneg %p191
        %s267 = sand.u32 %s181, 1
        %s268 = scalar_lea.sflag [#allocation4], %s267
        %s269 = sand.u32 %s181, 1
        %s270 = smul.addr %s269, 64
        %s271 = scalar_lea.vmem [#allocation3], %s270
        %p272 = scmp.lt.s32.totalorder %s21, 1
        %s273 = scalar_select %p272, %s21, 1
        %s274 = smul.addr %s273, 2
        %s275 = smul.addr %s274, 4
        %s276 = scalar_lea.vmem %s0, %s275
        %v277 = vld [vmem:[%s276] sm:$0xff]
        %v278 = vld [vmem:[%s1] sm:$0xff]
        %v279 = vld [vmem:[%s1 + $0x8] sm:$0xff]
        %v280 = vld [vmem:[%s4] sm:$0xff]
        %v281 = vld [vmem:[%s4 + $0x8] sm:$0xff]
        %283 = vset.pattern.permute.xlu0 0
        %284 = vperm.xlu0 %283, %v280
        %v285 = vpop.permute.xlu0 %284
        %288 = vset.pattern.permute.xlu0 0
        %289 = vperm.xlu0 %288, %v281
        %v290 = vpop.permute.xlu0 %289
        %v293 = vcombine.high %v277, %v277
        %vm294 = vcmask 31744
        %v296 = vsel %vm294, %v278, 0
        %v299 = vsel %vm294, %v279, 0
        %vm301 = vcmask 1043456
        %v302 = vsel %vm301, %v277, 0
        %v304 = vsel %vm301, %v293, 0
        %306 = vmatprep.subr.mxu0 %v304
        %307 = vmatpush1.msra.mxu0 %v302
        %308 = vmatprep.subr.mxu0 0.0
        %309 = vmatpush1.msra.mxu0 0.0
        %310 = vmatprep.subr.mxu0 0.0
        %311 = vmatpush1.msra.mxu0 0.0
        %312 = vmatprep.subr.mxu0 0.0
        %313 = vmatpush1.msra.mxu0 0.0
        %314 = vmatprep.subr.mxu0 0.0
        %315 = vmatpush1.msra.mxu0 0.0
        %316 = vmatprep.subr.mxu0 0.0
        %317 = vmatpush1.msra.mxu0 0.0
        %318 = vmatprep.subr.mxu0 0.0
        %319 = vmatpush1.msra.mxu0 0.0
        %320 = vmatprep.subr.mxu0 0.0
        %321 = vmatpush1.msra.mxu0 0.0
        %322 = vmatprep.subr.mxu0 0.0
        %323 = vmatpush1.msra.mxu0 0.0
        %324 = vmatprep.subr.mxu0 0.0
        %325 = vmatpush1.msra.mxu0 0.0
        %326 = vmatprep.subr.mxu0 0.0
        %327 = vmatpush1.msra.mxu0 0.0
        %328 = vmatprep.subr.mxu0 0.0
        %329 = vmatpush1.msra.mxu0 0.0
        %330 = vmatprep.subr.mxu0 0.0
        %331 = vmatpush1.msra.mxu0 0.0
        %332 = vmatprep.subr.mxu0 0.0
        %333 = vmatpush1.msra.mxu0 0.0
        %334 = vmatprep.subr.mxu0 0.0
        %335 = vmatpush1.msra.mxu0 0.0
        %336 = vmatprep.subr.mxu0 0.0
        %337 = vmatpush1.msra.mxu0 0.0
        %338 = vmatprep.subr.mxu0 0.0
        %339 = vmatpush1.msra.mxu0 0.0
        %340 = vmatprep.subr.mxu0 0.0
        %341 = vmatpush1.msra.mxu0 0.0
        %342 = vmatprep.subr.mxu0 0.0
        %343 = vmatpush1.msra.mxu0 0.0
        %344 = vmatprep.subr.mxu0 0.0
        %345 = vmatpush1.msra.mxu0 0.0
        %346 = vmatprep.subr.mxu0 0.0
        %347 = vmatpush1.msra.mxu0 0.0
        %348 = vmatprep.subr.mxu0 0.0
        %349 = vmatpush1.msra.mxu0 0.0
        %350 = vmatprep.subr.mxu0 0.0
        %351 = vmatpush1.msra.mxu0 0.0
        %352 = vmatprep.subr.mxu0 0.0
        %353 = vmatpush1.msra.mxu0 0.0
        %354 = vmatprep.subr.mxu0 0.0
        %355 = vmatpush1.msra.mxu0 0.0
        %356 = vmatprep.subr.mxu0 0.0
        %357 = vmatpush1.msra.mxu0 0.0
        %358 = vmatprep.subr.mxu0 0.0
        %359 = vmatpush1.msra.mxu0 0.0
        %360 = vmatprep.subr.mxu0 0.0
        %361 = vmatpush1.msra.mxu0 0.0
        %362 = vmatprep.subr.mxu0 0.0
        %363 = vmatpush1.msra.mxu0 0.0
        %364 = vmatprep.subr.mxu0 0.0
        %365 = vmatpush1.msra.mxu0 0.0
        %366 = vmatprep.subr.mxu0 0.0
        %367 = vmatpush1.msra.mxu0 0.0
        %368 = vmatprep.subr.mxu0 0.0
        %369 = vmatpush1.msra.mxu0 0.0
        %370 = vmatprep.mubr.f32.mxu0 0.0
        %371 = vmatmul.mubr.f32.gmra.mrb[0].mxu0 %v296
        %v372 = vpop.f32.mrb[0].mxu0
        %v373 = vadd.f32 %v285, %v372
        %v374 = vpop.f32.mrb[0].mxu0
        %v375 = vadd.f32 %v285, %v374
        %376 = vmatprep.mubr.f32.mxu0 0.0
        %377 = vmatmul.mubr.f32.gmra.mrb[0].mxu0 %v299
        %v378 = vpop.f32.mrb[0].mxu0
        %v379 = vadd.f32 %v290, %v378
        %v380 = vpop.f32.mrb[0].mxu0
        %v381 = vadd.f32 %v290, %v380
        %382 = vdwg.mxu0
        %v383 = vmax.f32 %v373, 0.0
        %v384 = vmax.f32 %v375, 0.0
        %v385 = vmax.f32 %v379, 0.0
        %v386 = vmax.f32 %v381, 0.0
        %v387 = vlaneseq
        %v388 = vand.u32 %v387, 127
        %v389 = vadd.s32 %v388, 128
        %vm390 = vcmp.lt.s32.totalorder %v388, 0
        %v391 = vsub.s32 0, %v388
        %v392 = vsel %vm390, %v391, %v388
        %v393 = vshrl.u32 %v392, 4
        %v394 = vand.u32 %v392, 15
        %v395 = vsub.s32 0, %v394
        %v396 = vsel %vm390, %v395, %v394
        %vm397 = vcmp.lt.s32.totalorder %v389, 0
        %v398 = vsub.s32 0, %v389
        %v399 = vsel %vm397, %v398, %v389
        %v400 = vshrl.u32 %v399, 4
        %v401 = vand.u32 %v399, 15
        %v402 = vsub.s32 0, %v401
        %v403 = vsel %vm397, %v402, %v401
        %vm404 = vcmp.ne.s32.totalorder %v396, 0
        %vm405 = vcmp.ne.s32.totalorder %v403, 0
        %vm406 = vcmp.lt.s32.totalorder %v396, 0
        %vm407 = vcmp.lt.s32.totalorder %v403, 0
        %vm408 = vmand %vm406, %vm404
        %vm409 = vmand %vm407, %vm405
        %v410 = vadd.s32 %v396, 16
        %v411 = vadd.s32 %v403, 16
        %v412 = vsel %vm408, %v410, %v396
        %v413 = vsel %vm409, %v411, %v403
        %vm414 = vcmp.ge.s32.totalorder %v412, 1
        %vm415 = vcmp.ge.s32.totalorder %v413, 1
        %vm416 = vcmp.le.s32.totalorder %v412, 14
        %vm417 = vcmp.le.s32.totalorder %v413, 14
        %422 = vrot.lane.b32.xlu0 %v383, 17
        %v423 = vpop.permute.xlu0 %422
        %424 = vrot.lane.b32.xlu0 %v384, 17
        %v425 = vpop.permute.xlu0 %424
        %426 = vrot.lane.b32.xlu0 %v385, 17
        %v427 = vpop.permute.xlu0 %426
        %428 = vrot.lane.b32.xlu0 %v386, 17
        %v429 = vpop.permute.xlu0 %428
        %vm430 = vcmask 138240
        %v431 = vsel %vm430, %v423, %v425
        %v432 = vsel %vm430, %v427, %v429
        %v437 = vsel %vm430, 0.0, %v423
        %v438 = vsel %vm430, 0.0, %v427
        %v439 = vsel %vm414, %v437, 0.0
        %v440 = vsel %vm415, %v431, 0.0
        %v441 = vsel %vm414, %v438, 0.0
        %v442 = vsel %vm415, %v432, 0.0
        %443 = vst [vmem:[#allocation2] sm:$0xff] %v439
        %444 = vst [vmem:[#allocation2 + $0x8] sm:$0xff] %v440
        %445 = vst [vmem:[#allocation2 + $0x10] sm:$0xff] %v441
        %446 = vst [vmem:[#allocation2 + $0x18] sm:$0xff] %v442
        %447 = vrot.lane.b32.xlu0 %v383, 16
        %v448 = vpop.permute.xlu0 %447
        %449 = vrot.lane.b32.xlu0 %v384, 16
        %v450 = vpop.permute.xlu0 %449
        %451 = vrot.lane.b32.xlu0 %v385, 16
        %v452 = vpop.permute.xlu0 %451
        %453 = vrot.lane.b32.xlu0 %v386, 16
        %v454 = vpop.permute.xlu0 %453
        %vm455 = vcmask 130048
        %v456 = vsel %vm455, %v448, %v450
        %v457 = vsel %vm455, %v452, %v454
        %v462 = vsel %vm455, 0.0, %v448
        %v463 = vsel %vm455, 0.0, %v452
        %464 = vst [vmem:[#allocation2 + $0x20] sm:$0xff] %v462
        %465 = vst [vmem:[#allocation2 + $0x28] sm:$0xff] %v456
        %466 = vst [vmem:[#allocation2 + $0x30] sm:$0xff] %v463
        %467 = vst [vmem:[#allocation2 + $0x38] sm:$0xff] %v457
        %468 = vrot.lane.b32.xlu0 %v383, 15
        %v469 = vpop.permute.xlu0 %468
        %470 = vrot.lane.b32.xlu0 %v384, 15
        %v471 = vpop.permute.xlu0 %470
        %472 = vrot.lane.b32.xlu0 %v385, 15
        %v473 = vpop.permute.xlu0 %472
        %474 = vrot.lane.b32.xlu0 %v386, 15
        %v475 = vpop.permute.xlu0 %474
        %vm476 = vcmask 121856
        %v477 = vsel %vm476, %v469, %v471
        %v478 = vsel %vm476, %v473, %v475
        %v483 = vsel %vm476, 0.0, %v469
        %v484 = vsel %vm476, 0.0, %v473
        %v485 = vsel %vm416, %v483, 0.0
        %v486 = vsel %vm417, %v477, 0.0
        %v487 = vsel %vm416, %v484, 0.0
        %v488 = vsel %vm417, %v478, 0.0
        %489 = vst [vmem:[#allocation2 + $0x40] sm:$0xff] %v485
        %490 = vst [vmem:[#allocation2 + $0x48] sm:$0xff] %v486
        %491 = vst [vmem:[#allocation2 + $0x50] sm:$0xff] %v487
        %492 = vst [vmem:[#allocation2 + $0x58] sm:$0xff] %v488
        %493 = vrot.lane.b32.xlu0 %v383, 1
        %v494 = vpop.permute.xlu0 %493
        %495 = vrot.lane.b32.xlu0 %v384, 1
        %v496 = vpop.permute.xlu0 %495
        %497 = vrot.lane.b32.xlu0 %v385, 1
        %v498 = vpop.permute.xlu0 %497
        %499 = vrot.lane.b32.xlu0 %v386, 1
        %v500 = vpop.permute.xlu0 %499
        %vm501 = vcmask 7168
        %v502 = vsel %vm501, %v494, %v496
        %v503 = vsel %vm501, %v498, %v500
        %v508 = vsel %vm501, 0.0, %v494
        %v509 = vsel %vm501, 0.0, %v498
        %v510 = vsel %vm414, %v508, 0.0
        %v511 = vsel %vm415, %v502, 0.0
        %v512 = vsel %vm414, %v509, 0.0
        %v513 = vsel %vm415, %v503, 0.0
        %514 = vst [vmem:[#allocation2 + $0x60] sm:$0xff] %v510
        %515 = vst [vmem:[#allocation2 + $0x68] sm:$0xff] %v511
        %516 = vst [vmem:[#allocation2 + $0x70] sm:$0xff] %v512
        %517 = vst [vmem:[#allocation2 + $0x78] sm:$0xff] %v513
        %518 = vst [vmem:[#allocation2 + $0x80] sm:$0xff] %v383
        %519 = vst [vmem:[#allocation2 + $0x88] sm:$0xff] %v384
        %520 = vst [vmem:[#allocation2 + $0x90] sm:$0xff] %v385
        %521 = vst [vmem:[#allocation2 + $0x98] sm:$0xff] %v386
        %522 = vrot.lane.b32.xlu0 %v383, 127
        %v523 = vpop.permute.xlu0 %522
        %524 = vrot.lane.b32.xlu0 %v384, 127
        %v525 = vpop.permute.xlu0 %524
        %526 = vrot.lane.b32.xlu0 %v385, 127
        %v527 = vpop.permute.xlu0 %526
        %528 = vrot.lane.b32.xlu0 %v386, 127
        %v529 = vpop.permute.xlu0 %528
        %vm530 = vcmask 1039360
        %v531 = vsel %vm530, %v523, %v525
        %v532 = vsel %vm530, %v527, %v529
        %v537 = vsel %vm530, %v525, 0.0
        %v538 = vsel %vm530, %v529, 0.0
        %v539 = vsel %vm416, %v531, 0.0
        %v540 = vsel %vm417, %v537, 0.0
        %v541 = vsel %vm416, %v532, 0.0
        %v542 = vsel %vm417, %v538, 0.0
        %543 = vst [vmem:[#allocation2 + $0xa0] sm:$0xff] %v539
        %544 = vst [vmem:[#allocation2 + $0xa8] sm:$0xff] %v540
        %545 = vst [vmem:[#allocation2 + $0xb0] sm:$0xff] %v541
        %546 = vst [vmem:[#allocation2 + $0xb8] sm:$0xff] %v542
        %547 = vrot.lane.b32.xlu0 %v383, 113
        %v548 = vpop.permute.xlu0 %547
        %549 = vrot.lane.b32.xlu0 %v384, 113
        %v550 = vpop.permute.xlu0 %549
        %551 = vrot.lane.b32.xlu0 %v385, 113
        %v552 = vpop.permute.xlu0 %551
        %553 = vrot.lane.b32.xlu0 %v386, 113
        %v554 = vpop.permute.xlu0 %553
        %vm555 = vcmask 924672
        %v556 = vsel %vm555, %v548, %v550
        %v557 = vsel %vm555, %v552, %v554
        %v562 = vsel %vm555, %v550, 0.0
        %v563 = vsel %vm555, %v554, 0.0
        %v564 = vsel %vm414, %v556, 0.0
        %v565 = vsel %vm415, %v562, 0.0
        %v566 = vsel %vm414, %v557, 0.0
        %v567 = vsel %vm415, %v563, 0.0
        %568 = vst [vmem:[#allocation2 + $0xc0] sm:$0xff] %v564
        %569 = vst [vmem:[#allocation2 + $0xc8] sm:$0xff] %v565
        %570 = vst [vmem:[#allocation2 + $0xd0] sm:$0xff] %v566
        %571 = vst [vmem:[#allocation2 + $0xd8] sm:$0xff] %v567
        %572 = vrot.lane.b32.xlu0 %v383, 112
        %v573 = vpop.permute.xlu0 %572
        %574 = vrot.lane.b32.xlu0 %v384, 112
        %v575 = vpop.permute.xlu0 %574
        %576 = vrot.lane.b32.xlu0 %v385, 112
        %v577 = vpop.permute.xlu0 %576
        %578 = vrot.lane.b32.xlu0 %v386, 112
        %v579 = vpop.permute.xlu0 %578
        %vm580 = vcmask 916480
        %v581 = vsel %vm580, %v573, %v575
        %v582 = vsel %vm580, %v577, %v579
        %v587 = vsel %vm580, %v575, 0.0
        %v588 = vsel %vm580, %v579, 0.0
        %589 = vst [vmem:[#allocation2 + $0xe0] sm:$0xff] %v581
        %590 = vst [vmem:[#allocation2 + $0xe8] sm:$0xff] %v587
        %591 = vst [vmem:[#allocation2 + $0xf0] sm:$0xff] %v582
        %592 = vst [vmem:[#allocation2 + $0xf8] sm:$0xff] %v588
        %593 = vrot.lane.b32.xlu0 %v383, 111
        %v594 = vpop.permute.xlu0 %593
        %595 = vrot.lane.b32.xlu0 %v384, 111
        %v596 = vpop.permute.xlu0 %595
        %597 = vrot.lane.b32.xlu0 %v385, 111
        %v598 = vpop.permute.xlu0 %597
        %599 = vrot.lane.b32.xlu0 %v386, 111
        %v600 = vpop.permute.xlu0 %599
        %vm601 = vcmask 908288
        %v602 = vsel %vm601, %v594, %v596
        %v603 = vsel %vm601, %v598, %v600
        %v608 = vsel %vm601, %v596, 0.0
        %v609 = vsel %vm601, %v600, 0.0
        %v610 = vsel %vm416, %v602, 0.0
        %v611 = vsel %vm417, %v608, 0.0
        %v612 = vsel %vm416, %v603, 0.0
        %v613 = vsel %vm417, %v609, 0.0
        %614 = vst [vmem:[#allocation2 + $0x100] sm:$0xff] %v610
        %615 = vst [vmem:[#allocation2 + $0x108] sm:$0xff] %v611
        %616 = vst [vmem:[#allocation2 + $0x110] sm:$0xff] %v612
        %617 = vst [vmem:[#allocation2 + $0x118] sm:$0xff] %v613
        %v618 = vld [vmem:[%s2] sm:$0xff]
        %v619 = vld [vmem:[%s2 + $0x8] sm:$0xff]
        %v620 = vld [vmem:[%s2 + $0x10] sm:$0xff]
        %v621 = vld [vmem:[%s2 + $0x18] sm:$0xff]
        %v622 = vld [vmem:[#allocation2] sm:$0xff]
        %v623 = vld [vmem:[#allocation2 + $0x8] sm:$0xff]
        %v624 = vld [vmem:[#allocation2 + $0x10] sm:$0xff]
        %v625 = vld [vmem:[#allocation2 + $0x18] sm:$0xff]
        %v626 = vld [vmem:[#allocation2 + $0x20] sm:$0xff]
        %v627 = vld [vmem:[#allocation2 + $0x28] sm:$0xff]
        %v628 = vld [vmem:[#allocation2 + $0x30] sm:$0xff]
        %v629 = vld [vmem:[#allocation2 + $0x38] sm:$0xff]
        %v630 = vld [vmem:[#allocation2 + $0x40] sm:$0xff]
        %v631 = vld [vmem:[#allocation2 + $0x48] sm:$0xff]
        %v632 = vld [vmem:[#allocation2 + $0x50] sm:$0xff]
        %v633 = vld [vmem:[#allocation2 + $0x58] sm:$0xff]
        %v634 = vld [vmem:[#allocation2 + $0x60] sm:$0xff]
        %v635 = vld [vmem:[#allocation2 + $0x68] sm:$0xff]
        %v636 = vld [vmem:[#allocation2 + $0x70] sm:$0xff]
        %v637 = vld [vmem:[#allocation2 + $0x78] sm:$0xff]
        %v638 = vld [vmem:[#allocation2 + $0x80] sm:$0xff]
        %v639 = vld [vmem:[#allocation2 + $0x88] sm:$0xff]
        %v640 = vld [vmem:[#allocation2 + $0x90] sm:$0xff]
        %v641 = vld [vmem:[#allocation2 + $0x98] sm:$0xff]
        %v642 = vld [vmem:[#allocation2 + $0xa0] sm:$0xff]
        %v643 = vld [vmem:[#allocation2 + $0xa8] sm:$0xff]
        %v644 = vld [vmem:[#allocation2 + $0xb0] sm:$0xff]
        %v645 = vld [vmem:[#allocation2 + $0xb8] sm:$0xff]
        %v646 = vld [vmem:[#allocation2 + $0xc0] sm:$0xff]
        %v647 = vld [vmem:[#allocation2 + $0xc8] sm:$0xff]
        %v648 = vld [vmem:[#allocation2 + $0xd0] sm:$0xff]
        %v649 = vld [vmem:[#allocation2 + $0xd8] sm:$0xff]
        %v650 = vld [vmem:[#allocation2 + $0xe0] sm:$0xff]
        %v651 = vld [vmem:[#allocation2 + $0xe8] sm:$0xff]
        %v652 = vld [vmem:[#allocation2 + $0xf0] sm:$0xff]
        %v653 = vld [vmem:[#allocation2 + $0xf8] sm:$0xff]
        %v654 = vld [vmem:[#allocation2 + $0x100] sm:$0xff]
        %v655 = vld [vmem:[#allocation2 + $0x108] sm:$0xff]
        %v656 = vld [vmem:[#allocation2 + $0x110] sm:$0xff]
        %v657 = vld [vmem:[#allocation2 + $0x118] sm:$0xff]
        %v658 = vld [vmem:[%s5] sm:$0xff]
        %v659 = vld [vmem:[%s5 + $0x8] sm:$0xff]
        %661 = vset.pattern.permute.xlu0 0
        %662 = vperm.xlu0 %661, %v658
        %v663 = vpop.permute.xlu0 %662
        %666 = vset.pattern.permute.xlu0 0
        %667 = vperm.xlu0 %666, %v659
        %v668 = vpop.permute.xlu0 %667
        %v671 = vsel %vm455, %v619, 0
        %v674 = vsel %vm455, %v621, 0
        %676 = vmatprep.subr.mxu0 %v623
        %677 = vmatpush1.msra.mxu0 %v622
        %678 = vmatprep.subr.mxu0 %v625
        %679 = vmatpush1.msra.mxu0 %v624
        %680 = vmatprep.subr.mxu0 %v627
        %681 = vmatpush1.msra.mxu0 %v626
        %682 = vmatprep.subr.mxu0 %v629
        %683 = vmatpush1.msra.mxu0 %v628
        %684 = vmatprep.subr.mxu0 %v631
        %685 = vmatpush1.msra.mxu0 %v630
        %686 = vmatprep.subr.mxu0 %v633
        %687 = vmatpush1.msra.mxu0 %v632
        %688 = vmatprep.subr.mxu0 %v635
        %689 = vmatpush1.msra.mxu0 %v634
        %690 = vmatprep.subr.mxu0 %v637
        %691 = vmatpush1.msra.mxu0 %v636
        %692 = vmatprep.subr.mxu0 %v639
        %693 = vmatpush1.msra.mxu0 %v638
        %694 = vmatprep.subr.mxu0 %v641
        %695 = vmatpush1.msra.mxu0 %v640
        %696 = vmatprep.subr.mxu0 %v643
        %697 = vmatpush1.msra.mxu0 %v642
        %698 = vmatprep.subr.mxu0 %v645
        %699 = vmatpush1.msra.mxu0 %v644
        %700 = vmatprep.subr.mxu0 %v647
        %701 = vmatpush1.msra.mxu0 %v646
        %702 = vmatprep.subr.mxu0 %v649
        %703 = vmatpush1.msra.mxu0 %v648
        %704 = vmatprep.subr.mxu0 %v651
        %705 = vmatpush1.msra.mxu0 %v650
        %706 = vmatprep.subr.mxu0 %v653
        %707 = vmatpush1.msra.mxu0 %v652
        %708 = vmatprep.subr.mxu0 %v655
        %709 = vmatpush1.msra.mxu0 %v654
        %710 = vmatprep.subr.mxu0 %v657
        %711 = vmatpush1.msra.mxu0 %v656
        %712 = vmatprep.subr.mxu0 0.0
        %713 = vmatpush1.msra.mxu0 0.0
        %714 = vmatprep.subr.mxu0 0.0
        %715 = vmatpush1.msra.mxu0 0.0
        %716 = vmatprep.subr.mxu0 0.0
        %717 = vmatpush1.msra.mxu0 0.0
        %718 = vmatprep.subr.mxu0 0.0
        %719 = vmatpush1.msra.mxu0 0.0
        %720 = vmatprep.subr.mxu0 0.0
        %721 = vmatpush1.msra.mxu0 0.0
        %722 = vmatprep.subr.mxu0 0.0
        %723 = vmatpush1.msra.mxu0 0.0
        %724 = vmatprep.subr.mxu0 0.0
        %725 = vmatpush1.msra.mxu0 0.0
        %726 = vmatprep.subr.mxu0 0.0
        %727 = vmatpush1.msra.mxu0 0.0
        %728 = vmatprep.subr.mxu0 0.0
        %729 = vmatpush1.msra.mxu0 0.0
        %730 = vmatprep.subr.mxu0 0.0
        %731 = vmatpush1.msra.mxu0 0.0
        %732 = vmatprep.subr.mxu0 0.0
        %733 = vmatpush1.msra.mxu0 0.0
        %734 = vmatprep.subr.mxu0 0.0
        %735 = vmatpush1.msra.mxu0 0.0
        %736 = vmatprep.subr.mxu0 0.0
        %737 = vmatpush1.msra.mxu0 0.0
        %738 = vmatprep.subr.mxu0 0.0
        %739 = vmatpush1.msra.mxu0 0.0
        %740 = vmatprep.mubr.f32.mxu0 %v671
        %741 = vmatmul.mubr.f32.gmra.mrb[0].mxu0 %v618
        %v742 = vpop.f32.mrb[0].mxu0
        %v743 = vadd.f32 %v663, %v742
        %v744 = vpop.f32.mrb[0].mxu0
        %v745 = vadd.f32 %v663, %v744
        %746 = vmatprep.mubr.f32.mxu0 %v674
        %747 = vmatmul.mubr.f32.gmra.mrb[0].mxu0 %v620
        %v748 = vpop.f32.mrb[0].mxu0
        %v749 = vadd.f32 %v668, %v748
        %v750 = vpop.f32.mrb[0].mxu0
        %v751 = vadd.f32 %v668, %v750
        %752 = vdwg.mxu0
        %v753 = vmax.f32 %v743, 0.0
        %v754 = vmax.f32 %v745, 0.0
        %v755 = vmax.f32 %v749, 0.0
        %v756 = vmax.f32 %v751, 0.0
        %v757 = vld [vmem:[%s3] sm:$0xff]
        %v758 = vld [vmem:[%s3 + $0x8] sm:$0xff]
        %v759 = vld [vmem:[%s3 + $0x10] sm:$0xff]
        %v760 = vld [vmem:[%s3 + $0x18] sm:$0xff]
        %v761 = vld [vmem:[%s6] sm:$0xff]
        %v762 = vld [vmem:[%s6 + $0x8] sm:$0xff]
        %v763 = vld [vmem:[%s6 + $0x10] sm:$0xff]
        %v764 = vld [vmem:[%s6 + $0x18] sm:$0xff]
        %766 = vset.pattern.permute.xlu0 0
        %767 = vperm.xlu0 %766, %v761
        %v768 = vpop.permute.xlu0 %767
        %771 = vset.pattern.permute.xlu0 0
        %772 = vperm.xlu0 %771, %v762
        %v773 = vpop.permute.xlu0 %772
        %776 = vset.pattern.permute.xlu0 0
        %777 = vperm.xlu0 %776, %v763
        %v778 = vpop.permute.xlu0 %777
        %781 = vset.pattern.permute.xlu0 0
        %782 = vperm.xlu0 %781, %v764
        %v783 = vpop.permute.xlu0 %782
        %v786 = vsel %vm455, %v757, 0
        %v789 = vsel %vm455, %v758, 0
        %v792 = vsel %vm455, %v759, 0
        %v795 = vsel %vm455, %v760, 0
        %797 = vmatprep.subr.mxu0 %v754
        %798 = vmatpush1.msra.mxu0 %v753
        %799 = vmatprep.subr.mxu0 %v756
        %800 = vmatpush1.msra.mxu0 %v755
        %801 = vmatprep.subr.mxu0 0.0
        %802 = vmatpush1.msra.mxu0 0.0
        %803 = vmatprep.subr.mxu0 0.0
        %804 = vmatpush1.msra.mxu0 0.0
        %805 = vmatprep.subr.mxu0 0.0
        %806 = vmatpush1.msra.mxu0 0.0
        %807 = vmatprep.subr.mxu0 0.0
        %808 = vmatpush1.msra.mxu0 0.0
        %809 = vmatprep.subr.mxu0 0.0
        %810 = vmatpush1.msra.mxu0 0.0
        %811 = vmatprep.subr.mxu0 0.0
        %812 = vmatpush1.msra.mxu0 0.0
        %813 = vmatprep.subr.mxu0 0.0
        %814 = vmatpush1.msra.mxu0 0.0
        %815 = vmatprep.subr.mxu0 0.0
        %816 = vmatpush1.msra.mxu0 0.0
        %817 = vmatprep.subr.mxu0 0.0
        %818 = vmatpush1.msra.mxu0 0.0
        %819 = vmatprep.subr.mxu0 0.0
        %820 = vmatpush1.msra.mxu0 0.0
        %821 = vmatprep.subr.mxu0 0.0
        %822 = vmatpush1.msra.mxu0 0.0
        %823 = vmatprep.subr.mxu0 0.0
        %824 = vmatpush1.msra.mxu0 0.0
        %825 = vmatprep.subr.mxu0 0.0
        %826 = vmatpush1.msra.mxu0 0.0
        %827 = vmatprep.subr.mxu0 0.0
        %828 = vmatpush1.msra.mxu0 0.0
        %829 = vmatprep.subr.mxu0 0.0
        %830 = vmatpush1.msra.mxu0 0.0
        %831 = vmatprep.subr.mxu0 0.0
        %832 = vmatpush1.msra.mxu0 0.0
        %833 = vmatprep.subr.mxu0 0.0
        %834 = vmatpush1.msra.mxu0 0.0
        %835 = vmatprep.subr.mxu0 0.0
        %836 = vmatpush1.msra.mxu0 0.0
        %837 = vmatprep.subr.mxu0 0.0
        %838 = vmatpush1.msra.mxu0 0.0
        %839 = vmatprep.subr.mxu0 0.0
        %840 = vmatpush1.msra.mxu0 0.0
        %841 = vmatprep.subr.mxu0 0.0
        %842 = vmatpush1.msra.mxu0 0.0
        %843 = vmatprep.subr.mxu0 0.0
        %844 = vmatpush1.msra.mxu0 0.0
        %845 = vmatprep.subr.mxu0 0.0
        %846 = vmatpush1.msra.mxu0 0.0
        %847 = vmatprep.subr.mxu0 0.0
        %848 = vmatpush1.msra.mxu0 0.0
        %849 = vmatprep.subr.mxu0 0.0
        %850 = vmatpush1.msra.mxu0 0.0
        %851 = vmatprep.subr.mxu0 0.0
        %852 = vmatpush1.msra.mxu0 0.0
        %853 = vmatprep.subr.mxu0 0.0
        %854 = vmatpush1.msra.mxu0 0.0
        %855 = vmatprep.subr.mxu0 0.0
        %856 = vmatpush1.msra.mxu0 0.0
        %857 = vmatprep.subr.mxu0 0.0
        %858 = vmatpush1.msra.mxu0 0.0
        %859 = vmatprep.subr.mxu0 0.0
        %860 = vmatpush1.msra.mxu0 0.0
        %861 = vmatprep.mubr.f32.mxu0 0.0
        %862 = vmatmul.mubr.f32.gmra.mrb[0].mxu0 %v786
        %v863 = vpop.f32.mrb[0].mxu0
        %v864 = vadd.f32 %v768, %v863
        %v865 = vpop.f32.mrb[0].mxu0
        %v866 = vadd.f32 %v768, %v865
        %867 = vmatprep.mubr.f32.mxu0 0.0
        %868 = vmatmul.mubr.f32.gmra.mrb[0].mxu0 %v789
        %v869 = vpop.f32.mrb[0].mxu0
        %v870 = vadd.f32 %v773, %v869
        %v871 = vpop.f32.mrb[0].mxu0
        %v872 = vadd.f32 %v773, %v871
        %873 = vmatprep.mubr.f32.mxu0 0.0
        %874 = vmatmul.mubr.f32.gmra.mrb[0].mxu0 %v792
        %v875 = vpop.f32.mrb[0].mxu0
        %v876 = vadd.f32 %v778, %v875
        %v877 = vpop.f32.mrb[0].mxu0
        %v878 = vadd.f32 %v778, %v877
        %879 = vmatprep.mubr.f32.mxu0 0.0
        %880 = vmatmul.mubr.f32.gmra.mrb[0].mxu0 %v795
        %v881 = vpop.f32.mrb[0].mxu0
        %v882 = vadd.f32 %v783, %v881
        %v883 = vpop.f32.mrb[0].mxu0
        %v884 = vadd.f32 %v783, %v883
        %885 = vdwg.mxu0
        %v887 = vcombine.low %v277, %v277
        %v889 = vsel %vm301, %v277, %v887
        %v890 = vsel %vm301, %v293, %v277
        %v891 = vadd.f32 %v864, %v889
        %v892 = vadd.f32 %v866, %v890
        %v893 = vadd.f32 %v870, %v889
        %v894 = vadd.f32 %v872, %v890
        %v895 = vadd.f32 %v876, %v889
        %v896 = vadd.f32 %v878, %v890
        %v897 = vadd.f32 %v882, %v889
        %v898 = vadd.f32 %v884, %v890
        %v899 = vmax.f32 %v891, 0.0
        %v900 = vmax.f32 %v892, 0.0
        %v901 = vmax.f32 %v893, 0.0
        %v902 = vmax.f32 %v894, 0.0
        %v903 = vmax.f32 %v895, 0.0
        %v904 = vmax.f32 %v896, 0.0
        %v905 = vmax.f32 %v897, 0.0
        %v906 = vmax.f32 %v898, 0.0
        %907 = vst [vmem:[%s271] sm:$0xff] %v899
        %908 = vst [vmem:[%s271 + $0x8] sm:$0xff] %v900
        %909 = vst [vmem:[%s271 + $0x10] sm:$0xff] %v901
        %910 = vst [vmem:[%s271 + $0x18] sm:$0xff] %v902
        %911 = vst [vmem:[%s271 + $0x20] sm:$0xff] %v903
        %912 = vst [vmem:[%s271 + $0x28] sm:$0xff] %v904
        %913 = vst [vmem:[%s271 + $0x30] sm:$0xff] %v905
        %914 = vst [vmem:[%s271 + $0x38] sm:$0xff] %v906
        %s915 = sand.u32 %s181, 1
        %s916 = scalar_lea.sflag [#allocation4], %s915
        %s917 = sand.u32 %s181, 1
        %s918 = smul.addr %s917, 64
        %s919 = scalar_lea.vmem [#allocation3], %s918
        // Predicated region
        $region49: #{tpu_custom_call.1} parent=47 // pred_check
          %p920 = pneg %p191
        $region50: #{tpu_custom_call.1} parent=47 // pred_check_branch
          %922 = sbr.rel (%p920) target = $region52
        $region51: #{tpu_custom_call.1} parent=47 // pred_region
          %s924 = ssub.s32 1024, 1024
          %925 = vsyncadd %s916, %s924
          %s926 = smul.addr %s21, 8
          %s927 = smul.addr %s926, 128
          %s928 = scalar_lea.hbm %s7, %s927
          %s929 = sshll.u32 %s919, 4
          %s930 = int_to_ptr.vmem [resolvable:$true] %s929
          %935 = dma.vmem_to_hbm [thread:$0]  %s930, 1024, %s928, %s916, 256, 256, 16
        $region52: #{tpu_custom_call.1} parent=47 // pred_fallthru
          _
      $region48: #{tpu_custom_call.1} parent=5 // pred_fallthru
        _
      %p936 = scmp.le.s32.totalorder 2, %s16
      // Predicated region
      $region53: #{tpu_custom_call.1} parent=5 // pred_check
        %p937 = pneg %p936
      $region54: #{tpu_custom_call.1} parent=5 // pred_check_branch
        %939 = sbr.rel (%p937) target = $region56
      $region55: #{tpu_custom_call.1} parent=5 // pred_region
        %s940 = ssub.s32 %s16, 2
        // Predicated region
        $region57: #{tpu_custom_call.1} parent=55 // pred_check
          %p941 = pneg %p197
        $region58: #{tpu_custom_call.1} parent=55 // pred_check_branch
          %943 = sbr.rel (%p941) target = $region60
        $region59: #{tpu_custom_call.1} parent=55 // pred_region
          %s944 = sand.u32 %s182, 1
          %s945 = scalar_lea.sflag [#allocation4], %s944
          %s946 = sand.u32 %s182, 1
          %s947 = smul.addr %s946, 64
          %s948 = scalar_lea.vmem [#allocation3], %s947
          %949 = dma.done %s945, 1024
        $region60: #{tpu_custom_call.1} parent=55 // pred_fallthru
          _
      $region56: #{tpu_custom_call.1} parent=5 // pred_fallthru
        _
    $region6: #{tpu_custom_call.1} parent=1 // loop_footer
      %s20 = sadd.s32 1, %s16
    $region7: #{tpu_custom_call.1} parent=1 // loop_footer_branch
      %15 = sbr.rel target = $region3
    $region8: #{tpu_custom_call.1} parent=1 // loop_exit
      _
    %950 = vsyncpa [#allocation4], 1
    %s951 = scalar_lea.sflag [#allocation4], 1
    %952 = vsyncpa %s951, 1

</llo_original>
